<compile_context>
chip_gen: v7x
topology: tpu7x:2x2x1
jax: 0.10.0
libtpu: 0.0.40
codegen_flags: <defaults>
</compile_context>

<pallas_src>
import functools

import jax
import jax.numpy as jnp
from jax.experimental import pallas as pl
from jax.experimental.pallas import tpu as pltpu


def _round_up(v, m):
    return ((v + m - 1) // m) * m


def _hard_clip_kernel(x_ref, o_ref, *, g, a_min, a_max):
    # Pure VPU elementwise hot path: gain then hard clip.  Ragged edge blocks
    # read unspecified padding and have those writes discarded by Pallas, so
    # no explicit masking is needed for an elementwise op.
    o_ref[...] = jnp.clip(g * x_ref[...], a_min, a_max)


def hard_clipper(x, in_gain=0.0, positive_threshold=-6.0,
                 negative_threshold=-6.0, oversampling=1,
                 block_budget_elems=1024 * 1024):
    """x: (batch, channels, samples) float32. Returns same shape/dtype.

    block_budget_elems: target elements per VMEM block (default 1M = 4 MiB f32,
    i.e. ~16 MiB pipelined with input+output double-buffering).
    """
    if oversampling != 1:
        # TODO(synk): oversampled FFT resample path not implemented in Pallas.
        raise NotImplementedError("oversampling > 1 not supported in Pallas port")

    a_max = float(10.0 ** (positive_threshold / 20.0))
    a_min = float(-(10.0 ** (negative_threshold / 20.0)))
    g = float(10.0 ** (in_gain / 20.0))

    b, c, s = x.shape
    rows = b * c
    x2 = x.reshape(rows, s)  # contiguous view; no extra HBM pass

    # Tile selection: lane axis first (wide multiple of 128 for unmasked vst),
    # then fill the remaining block budget along the sublane axis (multiple of
    # 8).  Both dims are clamped to the (8,128)-rounded array extents so small
    # inputs do not allocate oversized VMEM blocks.
    r8 = _round_up(rows, 8)
    s128 = _round_up(s, 128)
    tc = min(s128, max(128, ((block_budget_elems // 8) // 128) * 128))
    tr = min(r8, max(8, ((block_budget_elems // tc) // 8) * 8))

    grid = (pl.cdiv(rows, tr), pl.cdiv(s, tc))
    kernel = functools.partial(_hard_clip_kernel, g=g, a_min=a_min, a_max=a_max)

    out = pl.pallas_call(
        kernel,
        out_shape=jax.ShapeDtypeStruct((rows, s), x2.dtype),
        grid=grid,
        in_specs=[pl.BlockSpec((tr, tc), lambda i, j: (i, j))],
        out_specs=pl.BlockSpec((tr, tc), lambda i, j: (i, j)),
        compiler_params=pltpu.CompilerParams(
            dimension_semantics=("parallel", "parallel"),
            # ~16 MiB actually pipelined; raise the scoped limit so v5e's
            # 16 MiB default does not reject the block size.
            vmem_limit_bytes=48 * 1024 * 1024,
        ),
    )(x2)

    return out.reshape(b, c, s)


if __name__ == "__main__":
    key = jax.random.PRNGKey(0)
    k1, k2 = jax.random.split(key)

    # Test 1: aligned audio-like input (batch=2, channels=4, samples=128).
    x = jax.random.normal(k1, (2, 4, 128), dtype=jnp.float32)
    y = hard_clipper(x, in_gain=0.0, positive_threshold=-6.0,
                     negative_threshold=-6.0, oversampling=1)
    y = jax.block_until_ready(y)
    a_max = 10.0 ** (-6.0 / 20.0)
    a_min = -(10.0 ** (-6.0 / 20.0))
    ref = jnp.clip(1.0 * x, a_min, a_max)
    assert y.shape == x.shape
    assert jnp.max(jnp.abs(y - ref)) < 1e-6

    # Test 2: non-(8,128)-aligned shape to exercise the ragged-edge (cdiv grid)
    # path that replaced a host-side pad/slice.
    x2 = jax.random.normal(k2, (3, 2, 200), dtype=jnp.float32)
    y2 = hard_clipper(x2, in_gain=6.0, positive_threshold=-3.0,
                      negative_threshold=-9.0, oversampling=1)
    y2 = jax.block_until_ready(y2)
    g2 = 10.0 ** (6.0 / 20.0)
    a_max2 = 10.0 ** (-3.0 / 20.0)
    a_min2 = -(10.0 ** (-9.0 / 20.0))
    ref2 = jnp.clip(g2 * x2, a_min2, a_max2)
    assert y2.shape == x2.shape
    assert jnp.max(jnp.abs(y2 - ref2)) < 1e-5

    print("KERNEL_OK")
</pallas_src>

<mosaic_0001>
module attributes {stable_mosaic.version = 11 : i64} {
  func.func @_hard_clip_kernel(%arg0: i32, %arg1: i32, %arg2: memref<8x128xf32, #tpu.memory_space<vmem>>, %arg3: memref<8x128xf32, #tpu.memory_space<vmem>>) attributes {dimension_semantics = [#tpu.dimension_semantics<parallel>, #tpu.dimension_semantics<parallel>], iteration_bounds = array<i64: 1, 1>, scalar_prefetch = 0 : i64, scratch_operands = 0 : i64, tpu.core_type = #tpu.core_type<tc>, window_params = [{transform_indices = @transform_0, window_bounds = array<i64: 8, 128>}, {transform_indices = @transform_1, window_bounds = array<i64: 8, 128>}]} {
    %c0 = arith.constant 0 : index
    %c0_0 = arith.constant 0 : index
    %0 = vector.load %arg2[%c0, %c0_0] : memref<8x128xf32, #tpu.memory_space<vmem>>, vector<8x128xf32>
    %cst = arith.constant 1.000000e+00 : f32
    %1 = vector.broadcast %cst : f32 to vector<8x128xf32>
    %2 = arith.mulf %1, %0 : vector<8x128xf32>
    %cst_1 = arith.constant -0.501187205 : f32
    %cst_2 = arith.constant 0.501187205 : f32
    %3 = vector.broadcast %cst_1 : f32 to vector<8x128xf32>
    %4 = arith.maximumf %3, %2 : vector<8x128xf32>
    %5 = vector.broadcast %cst_2 : f32 to vector<8x128xf32>
    %6 = arith.minimumf %5, %4 : vector<8x128xf32>
    %c0_3 = arith.constant 0 : index
    %c0_4 = arith.constant 0 : index
    %7 = vector.load %arg3[%c0_3, %c0_4] : memref<8x128xf32, #tpu.memory_space<vmem>>, vector<8x128xf32>
    tpu.vector_store %arg3[%c0_3, %c0_4], %6 {strides = array<i32>} : memref<8x128xf32, #tpu.memory_space<vmem>>, vector<8x128xf32>,
    return
  }
  func.func @transform_0(%arg0: i32, %arg1: i32) -> (i32, i32) {
    %c0_i32 = arith.constant 0 : i32
    return %arg0, %arg1 : i32, i32
  }
  func.func @transform_1(%arg0: i32, %arg1: i32) -> (i32, i32) {
    %c0_i32 = arith.constant 0 : i32
    return %arg0, %arg1 : i32, i32
  }
}

</mosaic_0001>

<llo_original>
// kernel: tpu_custom_call.1
$region0: #{tpu_custom_call.1}
  #allocation0 [shape = 'u32[]', space=smem, size = 0x4, offset = 0x4, fixed_abs, tag = 'smem constant byte address 0x4 - core index']
  #allocation1 [shape = 'u32[144,128]{1,0:T(1,128)}', space=vmem, size = 0x12000, scoped, tag = 'internal scratch']
  %s0 = inlined_call_operand.hbm [shape: f32[8,128], index: 0, kind: input, shape index: {}]
  %s1 = inlined_call_operand.hbm [shape: f32[8,128], index: 1, kind: output, shape index: {}]
  %s2 = sld [smem:[#allocation0]]
  $region18: #{tpu_custom_call.1} parent=0
    _
  %s4 = ssub.s32 1, %s2
  %s5 = scalar_select 0, %s4, %s2
  $region1: #{tpu_custom_call.1} parent=0
    #allocation2 [shape = 'u8[4096]{0}', space=vmem, size = 0x1000, scoped, tag = 'input window, operand 0, single buffered']
    #allocation3 [shape = 's32[1]{0}', space=sflag, size = 0x4, scoped, tag = 'scoped memory for tpu_custom_call.1']
    #allocation4 [shape = 's32[1]{0}', space=sflag, size = 0x4, scoped, tag = 'scoped memory for tpu_custom_call.1']
    #allocation5 [shape = 'u8[4096]{0}', space=vmem, size = 0x1000, scoped, tag = 'output window, operand 0, single buffered']
    %6 = vsyncpa [#allocation3], 0
    %7 = vsyncpa [#allocation4], 0
    // Predicated region
    $region2: #{tpu_custom_call.1} parent=1 // pred_check
      _
    $region3: #{tpu_custom_call.1} parent=1 // pred_check_branch
      %9 = sbr.rel (0) target = $region5
    $region4: #{tpu_custom_call.1} parent=1 // pred_region
      %s11 = ssub.s32 128, 128
      %12 = vsyncadd [#allocation3], %s11
      %s14 = sshll.u32 [#allocation2], 4
      %s15 = int_to_ptr.vmem [resolvable:$true] %s14
      %17 = dma.hbm_to_vmem [thread:$0]  %s0, 128, %s15, [#allocation3]
    $region5: #{tpu_custom_call.1} parent=1 // pred_fallthru
      _
    // Predicated region
    $region6: #{tpu_custom_call.1} parent=1 // pred_check
      _
    $region7: #{tpu_custom_call.1} parent=1 // pred_check_branch
      %19 = sbr.rel (0) target = $region9
    $region8: #{tpu_custom_call.1} parent=1 // pred_region
      %20 = dma.done [#allocation3], 128
    $region9: #{tpu_custom_call.1} parent=1 // pred_fallthru
      _
    %v21 = vld [vmem:[#allocation2] sm:$0xff]
    %v22 = vmax.f32 %v21, -0.5011872
    %v23 = vmin.f32 %v22, 0.5011872
    %24 = vst [vmem:[#allocation5] sm:$0xff] %v23
    // Predicated region
    $region10: #{tpu_custom_call.1} parent=1 // pred_check
      _
    $region11: #{tpu_custom_call.1} parent=1 // pred_check_branch
      %26 = sbr.rel (0) target = $region13
    $region12: #{tpu_custom_call.1} parent=1 // pred_region
      %s28 = ssub.s32 128, 128
      %29 = vsyncadd [#allocation4], %s28
      %s31 = sshll.u32 [#allocation5], 4
      %s32 = int_to_ptr.vmem [resolvable:$true] %s31
      %34 = dma.vmem_to_hbm [thread:$0]  %s32, 128, %s1, [#allocation4]
    $region13: #{tpu_custom_call.1} parent=1 // pred_fallthru
      _
    // Predicated region
    $region14: #{tpu_custom_call.1} parent=1 // pred_check
      _
    $region15: #{tpu_custom_call.1} parent=1 // pred_check_branch
      %36 = sbr.rel (0) target = $region17
    $region16: #{tpu_custom_call.1} parent=1 // pred_region
      %37 = dma.done [#allocation4], 128
    $region17: #{tpu_custom_call.1} parent=1 // pred_fallthru
      _
    %38 = vsyncpa [#allocation3], 1
    %39 = vsyncpa [#allocation4], 1

</llo_original>
